<compile_context>
chip_gen: v6e
topology: v6e:2x2x1
jax: 0.10.0
libtpu: 0.0.40
codegen_flags: <defaults>
</compile_context>

<pallas_src>
import jax
import jax.numpy as jnp
from jax.experimental import pallas as pl
from jax.experimental.pallas import tpu as pltpu


# ----------------------------------------------------------------------------
# Helpers
# ----------------------------------------------------------------------------

def _round_up(x, m):
    return ((x + m - 1) // m) * m


def _pick_batch_tile(b):
    """Largest sublane-friendly batch tile that divides B (falls back to B)."""
    for tb in (128, 64, 32, 16, 8):
        if b % tb == 0:
            return tb
    return b


# ----------------------------------------------------------------------------
# Fused DEDR kernel
# ----------------------------------------------------------------------------

def dedr_fused_kernel(xb_ref, mb_ref, invdb_ref,
                      xl_ref, ml_ref, invdl_ref,
                      vcat_ref, wv_ref, bv_ref,
                      wpool_ref, bpool_ref, o_ref):
    """Both encoders' pooling + poolers + concat in one kernel.

    xb_ref    : [TB, S, Hb]      bf16  BERT summed embeddings
    mb_ref    : [TB, 1, S]       bf16  BERT attention mask
    invdb_ref : [TB, 1]          f32   1 / BERT token count
    xl_ref    : [TB, S, Hl]      bf16  LXMERT text embeddings
    ml_ref    : [TB, 1, S]       bf16  LXMERT attention mask
    invdl_ref : [TB, 1]          f32   1 / LXMERT token count
    vcat_ref  : [TB, Sv, Dv+Dp]  bf16  concat(visual_feats, visual_pos)
    wv_ref    : [Dv+Dp, Hl]      bf16  packed visual projection
    bv_ref    : [1, Hl]          f32   visual projection bias
    wpool_ref : [Hb+Hl, OUT_PAD] bf16  block-diag(Wb, Wl), zero-padded columns
    bpool_ref : [1, OUT_PAD]     f32   concat(bb, bl), zero-padded
    o_ref     : [TB, OUT_PAD]    f32   lane-dense padded output
    """
    # --- text masked-sum pooling as an MXU contraction over seq (f32 acc) ---
    num_b = jnp.sum(
        jnp.einsum("bqs,bsh->bqh", mb_ref[...], xb_ref[...],
                   preferred_element_type=jnp.float32),
        axis=1)                                                   # [TB, Hb]
    pooled_b = num_b * invdb_ref[...]                             # [TB, Hb]

    num_l = jnp.sum(
        jnp.einsum("bqs,bsh->bqh", ml_ref[...], xl_ref[...],
                   preferred_element_type=jnp.float32),
        axis=1)                                                   # [TB, Hl]
    pooled_l = num_l * invdl_ref[...]                             # [TB, Hl]

    # --- visual branch: mean over visual tokens, one packed projection -------
    inv_sv = 1.0 / vcat_ref.shape[1]
    pooled_v = jnp.sum(vcat_ref[...].astype(jnp.float32), axis=1) * inv_sv
    vis = jnp.dot(pooled_v.astype(wv_ref.dtype), wv_ref[...],
                  preferred_element_type=jnp.float32) + bv_ref[...]  # [TB, Hl]

    combined_l = pooled_l + vis                                   # [TB, Hl]

    # --- both poolers as one block-diagonal, lane-padded matmul + tanh -------
    # tanh(concat(pb, cl) @ blockdiag(Wb, Wl) + concat(bb, bl))
    #   == concat(tanh(pb@Wb+bb), tanh(cl@Wl+bl))  (the DEDR output), with
    # zero-padded weight/bias columns producing tanh(0)=0 in the pad lanes.
    cat = jnp.concatenate([pooled_b, combined_l], axis=1)         # [TB, Hb+Hl]
    proj = jnp.dot(cat.astype(wpool_ref.dtype), wpool_ref[...],
                   preferred_element_type=jnp.float32) + bpool_ref[...]
    o_ref[...] = jnp.tanh(proj)                                   # [TB, OUT_PAD]


# ----------------------------------------------------------------------------
# Wrapper
# ----------------------------------------------------------------------------

def dedr_forward(et_params, emm_params,
                 input_ids_bert, token_type_ids_bert, attention_mask_bert,
                 input_ids_lxmert, token_type_ids_lxmert, attention_mask_lxmert,
                 visual_feats, visual_pos,
                 compute_dtype=jnp.bfloat16):
    f32 = jnp.float32

    # --- embedding gathers (XLA glue). See TODO(synk) at the top. ------------
    S_b = input_ids_bert.shape[1]
    S_l = input_ids_lxmert.shape[1]
    xb = (et_params["word_emb"][input_ids_bert]
          + et_params["type_emb"][token_type_ids_bert]
          + et_params["pos_emb"][None, :S_b, :]).astype(compute_dtype)
    xl = (emm_params["word_emb"][input_ids_lxmert]
          + emm_params["type_emb"][token_type_ids_lxmert]
          + emm_params["pos_emb"][None, :S_l, :]).astype(compute_dtype)

    mask_b = attention_mask_bert.astype(f32)
    mask_l = attention_mask_lxmert.astype(f32)
    # Precompute reciprocal token counts -> no in-kernel mask reduce.
    inv_den_b = 1.0 / jnp.maximum(jnp.sum(mask_b, axis=1, keepdims=True), 1.0)
    inv_den_l = 1.0 / jnp.maximum(jnp.sum(mask_l, axis=1, keepdims=True), 1.0)
    mb3 = mask_b.astype(compute_dtype)[:, None, :]                # [B, 1, S]
    ml3 = mask_l.astype(compute_dtype)[:, None, :]                # [B, 1, S]

    # Pack visual feats + positions so the kernel does one projection matmul.
    vcat = jnp.concatenate([visual_feats, visual_pos],
                           axis=-1).astype(compute_dtype)         # [B, Sv, Dv+Dp]

    B, _, Hb = xb.shape
    Hl = xl.shape[-1]
    H = Hb + Hl
    Sv, Dvp = vcat.shape[1], vcat.shape[2]
    out_pad = _round_up(H, 128)            # lane-dense output width

    # Block-diagonal pooler weight, column-padded to the lane-dense width.
    wpool = jnp.zeros((H, out_pad), f32)
    wpool = wpool.at[:Hb, :Hb].set(et_params["pool_w"])
    wpool = wpool.at[Hb:, Hb:H].set(emm_params["pool_w"])
    bpool = jnp.zeros((1, out_pad), f32)
    bpool = bpool.at[:, :Hb].set(et_params["pool_b"])
    bpool = bpool.at[:, Hb:H].set(emm_params["pool_b"])
    wv = jnp.concatenate([emm_params["vis_feat_w"], emm_params["vis_pos_w"]],
                         axis=0)                                  # [Dv+Dp, Hl]
    bv = emm_params["vis_b"]                                      # [1, Hl]

    wpool = wpool.astype(compute_dtype)
    wv = wv.astype(compute_dtype)

    TB = _pick_batch_tile(B)
    grid = (B // TB,)

    out_padded = pl.pallas_call(
        dedr_fused_kernel,
        out_shape=jax.ShapeDtypeStruct((B, out_pad), f32),
        grid=grid,
        in_specs=[
            pl.BlockSpec((TB, S_b, Hb), lambda i: (i, 0, 0)),
            pl.BlockSpec((TB, 1, S_b), lambda i: (i, 0, 0)),
            pl.BlockSpec((TB, 1), lambda i: (i, 0)),
            pl.BlockSpec((TB, S_l, Hl), lambda i: (i, 0, 0)),
            pl.BlockSpec((TB, 1, S_l), lambda i: (i, 0, 0)),
            pl.BlockSpec((TB, 1), lambda i: (i, 0)),
            pl.BlockSpec((TB, Sv, Dvp), lambda i: (i, 0, 0)),
            # Weights: constant index_map -> stay VMEM-resident across the grid.
            pl.BlockSpec((Dvp, Hl), lambda i: (0, 0)),
            pl.BlockSpec((1, Hl), lambda i: (0, 0)),
            pl.BlockSpec((H, out_pad), lambda i: (0, 0)),
            pl.BlockSpec((1, out_pad), lambda i: (0, 0)),
        ],
        out_specs=pl.BlockSpec((TB, out_pad), lambda i: (i, 0)),
        compiler_params=pltpu.CompilerParams(
            dimension_semantics=("parallel",)),   # batch tiles -> megacore on v7x
    )(xb, mb3, inv_den_b, xl, ml3, inv_den_l, vcat, wv, bv, wpool, bpool)

    # Drop the lane-padding columns (zeros) -> DEDR output [B, Hb + Hl].
    return out_padded[:, :H]


# ----------------------------------------------------------------------------
# Pure-JAX reference (f32) for correctness checking
# ----------------------------------------------------------------------------

def dedr_reference(et_params, emm_params,
                   input_ids_bert, token_type_ids_bert, attention_mask_bert,
                   input_ids_lxmert, token_type_ids_lxmert, attention_mask_lxmert,
                   visual_feats, visual_pos):
    def masked_mean(x, m):
        m = m.astype(jnp.float32)
        num = jnp.sum(x * m[:, :, None], axis=1)
        den = jnp.maximum(jnp.sum(m, axis=1, keepdims=True), 1.0)
        return num / den

    S_b = input_ids_bert.shape[1]
    emb_b = (et_params["word_emb"][input_ids_bert]
             + et_params["type_emb"][token_type_ids_bert]
             + et_params["pos_emb"][None, :S_b, :])
    reps_b = jnp.tanh(masked_mean(emb_b, attention_mask_bert)
                      @ et_params["pool_w"] + et_params["pool_b"])

    S_l = input_ids_lxmert.shape[1]
    emb_l = (emm_params["word_emb"][input_ids_lxmert]
             + emm_params["type_emb"][token_type_ids_lxmert]
             + emm_params["pos_emb"][None, :S_l, :])
    pooled_lt = masked_mean(emb_l, attention_mask_lxmert)
    vis = (jnp.mean(visual_feats, axis=1) @ emm_params["vis_feat_w"]
           + jnp.mean(visual_pos, axis=1) @ emm_params["vis_pos_w"]
           + emm_params["vis_b"])
    reps_l = jnp.tanh((pooled_lt + vis) @ emm_params["pool_w"]
                      + emm_params["pool_b"])
    return jnp.concatenate([reps_b, reps_l], axis=1)


# ----------------------------------------------------------------------------
# Deterministic parameter init
# ----------------------------------------------------------------------------

def init_bert_params(key, vocab, type_vocab, max_pos, h):
    ks = jax.random.split(key, 5)
    return {
        "word_emb": 0.02 * jax.random.normal(ks[0], (vocab, h), jnp.float32),
        "type_emb": 0.02 * jax.random.normal(ks[1], (type_vocab, h), jnp.float32),
        "pos_emb":  0.02 * jax.random.normal(ks[2], (max_pos, h), jnp.float32),
        "pool_w":   0.05 * jax.random.normal(ks[3], (h, h), jnp.float32),
        "pool_b":   0.05 * jax.random.normal(ks[4], (1, h), jnp.float32),
    }


def init_lxmert_params(key, vocab, type_vocab, max_pos, h, dv, dp):
    ks = jax.random.split(key, 8)
    return {
        "word_emb":   0.02 * jax.random.normal(ks[0], (vocab, h), jnp.float32),
        "type_emb":   0.02 * jax.random.normal(ks[1], (type_vocab, h), jnp.float32),
        "pos_emb":    0.02 * jax.random.normal(ks[2], (max_pos, h), jnp.float32),
        "vis_feat_w": 0.05 * jax.random.normal(ks[3], (dv, h), jnp.float32),
        "vis_pos_w":  0.05 * jax.random.normal(ks[4], (dp, h), jnp.float32),
        "vis_b":      0.05 * jax.random.normal(ks[5], (1, h), jnp.float32),
        "pool_w":     0.05 * jax.random.normal(ks[6], (h, h), jnp.float32),
        "pool_b":     0.05 * jax.random.normal(ks[7], (1, h), jnp.float32),
    }


# ----------------------------------------------------------------------------
# Main
# ----------------------------------------------------------------------------

if __name__ == "__main__":
    B, S = 2, 8
    H_BERT, H_LXMERT = 32, 32          # DEDR hidden = H_BERT + H_LXMERT = 64
    SV, DV, DP = 4, 16, 4
    VOCAB, TYPE_VOCAB, MAX_POS = 100, 2, 64

    root = jax.random.PRNGKey(0)
    k_et, k_emm, k_in = jax.random.split(root, 3)
    et_params = init_bert_params(k_et, VOCAB, TYPE_VOCAB, MAX_POS, H_BERT)
    emm_params = init_lxmert_params(k_emm, VOCAB, TYPE_VOCAB, MAX_POS,
                                    H_LXMERT, DV, DP)

    ki = jax.random.split(k_in, 6)
    input_ids_bert = jax.random.randint(ki[0], (B, S), 0, VOCAB, jnp.int32)
    token_type_ids_bert = jnp.zeros((B, S), jnp.int32)
    attention_mask_bert = jnp.ones((B, S), jnp.int32)

    input_ids_lxmert = jax.random.randint(ki[1], (B, S), 0, VOCAB, jnp.int32)
    token_type_ids_lxmert = jnp.zeros((B, S), jnp.int32)
    attention_mask_lxmert = jnp.ones((B, S), jnp.int32)

    visual_feats = jax.random.normal(ki[2], (B, SV, DV), jnp.float32)
    visual_pos = jax.random.uniform(ki[3], (B, SV, DP), jnp.float32)

    fwd = jax.jit(dedr_forward)
    out = fwd(et_params, emm_params,
              input_ids_bert, token_type_ids_bert, attention_mask_bert,
              input_ids_lxmert, token_type_ids_lxmert, attention_mask_lxmert,
              visual_feats, visual_pos)
    out = jax.block_until_ready(out)

    ref = dedr_reference(et_params, emm_params,
                         input_ids_bert, token_type_ids_bert,
                         attention_mask_bert, input_ids_lxmert,
                         token_type_ids_lxmert, attention_mask_lxmert,
                         visual_feats, visual_pos)

    assert out.shape == (B, H_BERT + H_LXMERT), out.shape
    assert out.dtype == jnp.float32
    assert bool(jnp.all(jnp.isfinite(out)))
    max_err = float(jnp.max(jnp.abs(out - ref)))
    assert max_err < 5e-2, f"max abs err vs f32 reference: {max_err}"
    print("KERNEL_OK")
</pallas_src>

<mosaic_0001>
module attributes {stable_mosaic.version = 11 : i64} {
  func.func @dedr_fused_kernel(%arg0: i32, %arg1: memref<2x8x32xbf16, #tpu.memory_space<vmem>>, %arg2: memref<2x1x8xbf16, #tpu.memory_space<vmem>>, %arg3: memref<2x1xf32, #tpu.memory_space<vmem>>, %arg4: memref<2x8x32xbf16, #tpu.memory_space<vmem>>, %arg5: memref<2x1x8xbf16, #tpu.memory_space<vmem>>, %arg6: memref<2x1xf32, #tpu.memory_space<vmem>>, %arg7: memref<2x4x20xbf16, #tpu.memory_space<vmem>>, %arg8: memref<20x32xbf16, #tpu.memory_space<vmem>>, %arg9: memref<1x32xf32, #tpu.memory_space<vmem>>, %arg10: memref<64x128xbf16, #tpu.memory_space<vmem>>, %arg11: memref<1x128xf32, #tpu.memory_space<vmem>>, %arg12: memref<2x128xf32, #tpu.memory_space<vmem>>) attributes {dimension_semantics = [#tpu.dimension_semantics<parallel>], iteration_bounds = array<i64: 1>, scalar_prefetch = 0 : i64, scratch_operands = 0 : i64, tpu.core_type = #tpu.core_type<tc>, window_params = [{transform_indices = @transform_0, window_bounds = array<i64: 2, 8, 32>}, {transform_indices = @transform_1, window_bounds = array<i64: 2, 1, 8>}, {transform_indices = @transform_2, window_bounds = array<i64: 2, 1>}, {transform_indices = @transform_3, window_bounds = array<i64: 2, 8, 32>}, {transform_indices = @transform_4, window_bounds = array<i64: 2, 1, 8>}, {transform_indices = @transform_5, window_bounds = array<i64: 2, 1>}, {transform_indices = @transform_6, window_bounds = array<i64: 2, 4, 20>}, {pipeline_mode = #tpu.pipeline_mode<synchronous>, transform_indices = @transform_7, window_bounds = array<i64: 20, 32>}, {pipeline_mode = #tpu.pipeline_mode<synchronous>, transform_indices = @transform_8, window_bounds = array<i64: 1, 32>}, {pipeline_mode = #tpu.pipeline_mode<synchronous>, transform_indices = @transform_9, window_bounds = array<i64: 64, 128>}, {pipeline_mode = #tpu.pipeline_mode<synchronous>, transform_indices = @transform_10, window_bounds = array<i64: 1, 128>}, {transform_indices = @transform_11, window_bounds = array<i64: 2, 128>}]} {
    %c0 = arith.constant 0 : index
    %c0_0 = arith.constant 0 : index
    %c0_1 = arith.constant 0 : index
    %0 = vector.load %arg2[%c0, %c0_0, %c0_1] : memref<2x1x8xbf16, #tpu.memory_space<vmem>>, vector<2x1x8xbf16>
    %c0_2 = arith.constant 0 : index
    %c0_3 = arith.constant 0 : index
    %c0_4 = arith.constant 0 : index
    %1 = vector.load %arg1[%c0_2, %c0_3, %c0_4] : memref<2x8x32xbf16, #tpu.memory_space<vmem>>, vector<2x8x32xbf16>
    "tpu.trace_start"() <{level = 10 : i32, message = "bqs,bsh->bqh"}> : () -> ()
    %cst = arith.constant dense<0.000000e+00> : vector<2x1x32xf32>
    %2 = tpu.matmul %0, %1, %cst {dimension_numbers = #tpu.dot_dimension_numbers<[2], [1], [1], [2], [0, 0, 0, 1, 1, 2], [0], [0]>} : vector<2x1x8xbf16>, vector<2x8x32xbf16>, vector<2x1x32xf32> -> vector<2x1x32xf32>
    "tpu.trace_stop"() : () -> ()
    %cst_5 = arith.constant dense<0.000000e+00> : vector<2x32xf32>
    %3 = vector.multi_reduction <add>, %2, %cst_5 [1] : vector<2x1x32xf32> to vector<2x32xf32>
    %c0_6 = arith.constant 0 : index
    %c0_7 = arith.constant 0 : index
    %4 = vector.load %arg3[%c0_6, %c0_7] : memref<2x1xf32, #tpu.memory_space<vmem>>, vector<2x1xf32>
    %5 = vector.broadcast %4 : vector<2x1xf32> to vector<2x32xf32>
    %6 = arith.mulf %3, %5 : vector<2x32xf32>
    %c0_8 = arith.constant 0 : index
    %c0_9 = arith.constant 0 : index
    %c0_10 = arith.constant 0 : index
    %7 = vector.load %arg5[%c0_8, %c0_9, %c0_10] : memref<2x1x8xbf16, #tpu.memory_space<vmem>>, vector<2x1x8xbf16>
    %c0_11 = arith.constant 0 : index
    %c0_12 = arith.constant 0 : index
    %c0_13 = arith.constant 0 : index
    %8 = vector.load %arg4[%c0_11, %c0_12, %c0_13] : memref<2x8x32xbf16, #tpu.memory_space<vmem>>, vector<2x8x32xbf16>
    "tpu.trace_start"() <{level = 10 : i32, message = "bqs,bsh->bqh"}> : () -> ()
    %cst_14 = arith.constant dense<0.000000e+00> : vector<2x1x32xf32>
    %9 = tpu.matmul %7, %8, %cst_14 {dimension_numbers = #tpu.dot_dimension_numbers<[2], [1], [1], [2], [0, 0, 0, 1, 1, 2], [0], [0]>} : vector<2x1x8xbf16>, vector<2x8x32xbf16>, vector<2x1x32xf32> -> vector<2x1x32xf32>
    "tpu.trace_stop"() : () -> ()
    %cst_15 = arith.constant dense<0.000000e+00> : vector<2x32xf32>
    %10 = vector.multi_reduction <add>, %9, %cst_15 [1] : vector<2x1x32xf32> to vector<2x32xf32>
    %c0_16 = arith.constant 0 : index
    %c0_17 = arith.constant 0 : index
    %11 = vector.load %arg6[%c0_16, %c0_17] : memref<2x1xf32, #tpu.memory_space<vmem>>, vector<2x1xf32>
    %12 = vector.broadcast %11 : vector<2x1xf32> to vector<2x32xf32>
    %13 = arith.mulf %10, %12 : vector<2x32xf32>
    %c0_18 = arith.constant 0 : index
    %c0_19 = arith.constant 0 : index
    %c0_20 = arith.constant 0 : index
    %14 = vector.load %arg7[%c0_18, %c0_19, %c0_20] : memref<2x4x20xbf16, #tpu.memory_space<vmem>>, vector<2x4x20xbf16>
    %15 = arith.extf %14 : vector<2x4x20xbf16> to vector<2x4x20xf32>
    %cst_21 = arith.constant dense<0.000000e+00> : vector<2x20xf32>
    %16 = vector.multi_reduction <add>, %15, %cst_21 [1] : vector<2x4x20xf32> to vector<2x20xf32>
    %cst_22 = arith.constant 2.500000e-01 : f32
    %17 = vector.broadcast %cst_22 : f32 to vector<2x20xf32>
    %18 = arith.mulf %16, %17 : vector<2x20xf32>
    %19 = arith.truncf %18 : vector<2x20xf32> to vector<2x20xbf16>
    %c0_23 = arith.constant 0 : index
    %c0_24 = arith.constant 0 : index
    %20 = vector.load %arg8[%c0_23, %c0_24] : memref<20x32xbf16, #tpu.memory_space<vmem>>, vector<20x32xbf16>
    %cst_25 = arith.constant dense<0.000000e+00> : vector<2x32xf32>
    %21 = tpu.matmul %19, %20, %cst_25 {dimension_numbers = #tpu.dot_dimension_numbers<[1], [0], [0], [1], [0, 0, 1, 1], [], []>} : vector<2x20xbf16>, vector<20x32xbf16>, vector<2x32xf32> -> vector<2x32xf32>
    %c0_26 = arith.constant 0 : index
    %c0_27 = arith.constant 0 : index
    %22 = vector.load %arg9[%c0_26, %c0_27] : memref<1x32xf32, #tpu.memory_space<vmem>>, vector<1x32xf32>
    %23 = vector.broadcast %22 : vector<1x32xf32> to vector<2x32xf32>
    %24 = arith.addf %21, %23 : vector<2x32xf32>
    %25 = arith.addf %13, %24 : vector<2x32xf32>
    %26 = tpu.concatenate %6, %25 in 1 : vector<2x32xf32>, vector<2x32xf32> -> vector<2x64xf32>
    %27 = arith.truncf %26 : vector<2x64xf32> to vector<2x64xbf16>
    %c0_28 = arith.constant 0 : index
    %c0_29 = arith.constant 0 : index
    %28 = vector.load %arg10[%c0_28, %c0_29] : memref<64x128xbf16, #tpu.memory_space<vmem>>, vector<64x128xbf16>
    %cst_30 = arith.constant dense<0.000000e+00> : vector<2x128xf32>
    %29 = tpu.matmul %27, %28, %cst_30 {dimension_numbers = #tpu.dot_dimension_numbers<[1], [0], [0], [1], [0, 0, 1, 1], [], []>} : vector<2x64xbf16>, vector<64x128xbf16>, vector<2x128xf32> -> vector<2x128xf32>
    %c0_31 = arith.constant 0 : index
    %c0_32 = arith.constant 0 : index
    %30 = vector.load %arg11[%c0_31, %c0_32] : memref<1x128xf32, #tpu.memory_space<vmem>>, vector<1x128xf32>
    %31 = vector.broadcast %30 : vector<1x128xf32> to vector<2x128xf32>
    %32 = arith.addf %29, %31 : vector<2x128xf32>
    %33 = math.tanh %32 : vector<2x128xf32>
    %c0_33 = arith.constant 0 : index
    %c0_34 = arith.constant 0 : index
    %34 = vector.load %arg12[%c0_33, %c0_34] : memref<2x128xf32, #tpu.memory_space<vmem>>, vector<2x128xf32>
    tpu.vector_store %arg12[%c0_33, %c0_34], %33 {strides = array<i32>} : memref<2x128xf32, #tpu.memory_space<vmem>>, vector<2x128xf32>,
    return
  }
  func.func @transform_0(%arg0: i32) -> (i32, i32, i32) {
    %c0_i32 = arith.constant 0 : i32
    %c0_i32_0 = arith.constant 0 : i32
    %c0_i32_1 = arith.constant 0 : i32
    return %arg0, %c0_i32, %c0_i32_0 : i32, i32, i32
  }
  func.func @transform_1(%arg0: i32) -> (i32, i32, i32) {
    %c0_i32 = arith.constant 0 : i32
    %c0_i32_0 = arith.constant 0 : i32
    %c0_i32_1 = arith.constant 0 : i32
    return %arg0, %c0_i32, %c0_i32_0 : i32, i32, i32
  }
  func.func @transform_2(%arg0: i32) -> (i32, i32) {
    %c0_i32 = arith.constant 0 : i32
    %c0_i32_0 = arith.constant 0 : i32
    return %arg0, %c0_i32 : i32, i32
  }
  func.func @transform_3(%arg0: i32) -> (i32, i32, i32) {
    %c0_i32 = arith.constant 0 : i32
    %c0_i32_0 = arith.constant 0 : i32
    %c0_i32_1 = arith.constant 0 : i32
    return %arg0, %c0_i32, %c0_i32_0 : i32, i32, i32
  }
  func.func @transform_4(%arg0: i32) -> (i32, i32, i32) {
    %c0_i32 = arith.constant 0 : i32
    %c0_i32_0 = arith.constant 0 : i32
    %c0_i32_1 = arith.constant 0 : i32
    return %arg0, %c0_i32, %c0_i32_0 : i32, i32, i32
  }
  func.func @transform_5(%arg0: i32) -> (i32, i32) {
    %c0_i32 = arith.constant 0 : i32
    %c0_i32_0 = arith.constant 0 : i32
    return %arg0, %c0_i32 : i32, i32
  }
  func.func @transform_6(%arg0: i32) -> (i32, i32, i32) {
    %c0_i32 = arith.constant 0 : i32
    %c0_i32_0 = arith.constant 0 : i32
    %c0_i32_1 = arith.constant 0 : i32
    return %arg0, %c0_i32, %c0_i32_0 : i32, i32, i32
  }
  func.func @transform_7(%arg0: i32) -> (i32, i32) {
    %c0_i32 = arith.constant 0 : i32
    %c0_i32_0 = arith.constant 0 : i32
    %c0_i32_1 = arith.constant 0 : i32
    return %c0_i32, %c0_i32_0 : i32, i32
  }
  func.func @transform_8(%arg0: i32) -> (i32, i32) {
    %c0_i32 = arith.constant 0 : i32
    %c0_i32_0 = arith.constant 0 : i32
    %c0_i32_1 = arith.constant 0 : i32
    return %c0_i32, %c0_i32_0 : i32, i32
  }
  func.func @transform_9(%arg0: i32) -> (i32, i32) {
    %c0_i32 = arith.constant 0 : i32
    %c0_i32_0 = arith.constant 0 : i32
    %c0_i32_1 = arith.constant 0 : i32
    return %c0_i32, %c0_i32_0 : i32, i32
  }
  func.func @transform_10(%arg0: i32) -> (i32, i32) {
    %c0_i32 = arith.constant 0 : i32
    %c0_i32_0 = arith.constant 0 : i32
    %c0_i32_1 = arith.constant 0 : i32
    return %c0_i32, %c0_i32_0 : i32, i32
  }
  func.func @transform_11(%arg0: i32) -> (i32, i32) {
    %c0_i32 = arith.constant 0 : i32
    %c0_i32_0 = arith.constant 0 : i32
    return %arg0, %c0_i32 : i32, i32
  }
}

</mosaic_0001>

<llo_original>
// kernel: dedr_forward.1
$region0: #{dedr_forward.1}
  #allocation0 [shape = 'u32[]', space=smem, size = 0x4, offset = 0x4, fixed_abs, tag = 'smem constant byte address 0x4 - core index']
  #allocation1 [shape = 'u32[144,128]{1,0:T(1,128)}', space=vmem, size = 0x12000, scoped, tag = 'internal scratch']
  %s0 = inlined_call_operand.vmem [shape: bf16[2,8,32], index: 0, kind: input, shape index: {}]
  %s1 = inlined_call_operand.vmem [shape: bf16[2,1,8], index: 1, kind: input, shape index: {}]
  %s2 = inlined_call_operand.vmem [shape: f32[2,1], index: 2, kind: input, shape index: {}]
  %s3 = inlined_call_operand.vmem [shape: bf16[2,8,32], index: 3, kind: input, shape index: {}]
  %s4 = inlined_call_operand.vmem [shape: bf16[2,1,8], index: 4, kind: input, shape index: {}]
  %s5 = inlined_call_operand.vmem [shape: f32[2,1], index: 5, kind: input, shape index: {}]
  %s6 = inlined_call_operand.vmem [shape: bf16[2,4,20], index: 6, kind: input, shape index: {}]
  %s7 = inlined_call_operand.vmem [shape: bf16[20,32], index: 7, kind: input, shape index: {}]
  %s8 = inlined_call_operand.vmem [shape: f32[1,32], index: 8, kind: input, shape index: {}]
  %s9 = inlined_call_operand.vmem [shape: bf16[64,128], index: 9, kind: input, shape index: {}]
  %s10 = inlined_call_operand.vmem [shape: f32[1,128], index: 10, kind: input, shape index: {}]
  %s11 = inlined_call_operand.hbm [shape: f32[2,128], index: 11, kind: output, shape index: {}]
  %s12 = sld [smem:[#allocation0]]
  $region54: #{dedr_forward.1} parent=0
    _
  %s14 = ssub.s32 1, %s12
  %s15 = scalar_select 0, %s14, %s12
  $region1: #{dedr_forward.1} parent=0
    #allocation2 [shape = 'u8[1024]{0}', space=vmem, size = 0x400, scoped, tag = 'output window, operand 0, single buffered']
    #allocation3 [shape = 's32[1]{0}', space=sflag, size = 0x4, scoped, tag = 'scoped memory for dedr_forward.1']
    %16 = vsyncpa [#allocation3], 0
    // Predicated region
    $region2: #{dedr_forward.1} parent=1 // pred_check
      _
    $region3: #{dedr_forward.1} parent=1 // pred_check_branch
      %18 = sbr.rel (0) target = $region5
    $region4: #{dedr_forward.1} parent=1 // pred_region
      _
    $region5: #{dedr_forward.1} parent=1 // pred_fallthru
      _
    // Predicated region
    $region6: #{dedr_forward.1} parent=1 // pred_check
      _
    $region7: #{dedr_forward.1} parent=1 // pred_check_branch
      %20 = sbr.rel (0) target = $region9
    $region8: #{dedr_forward.1} parent=1 // pred_region
      _
    $region9: #{dedr_forward.1} parent=1 // pred_fallthru
      _
    // Predicated region
    $region10: #{dedr_forward.1} parent=1 // pred_check
      _
    $region11: #{dedr_forward.1} parent=1 // pred_check_branch
      %22 = sbr.rel (0) target = $region13
    $region12: #{dedr_forward.1} parent=1 // pred_region
      _
    $region13: #{dedr_forward.1} parent=1 // pred_fallthru
      _
    // Predicated region
    $region14: #{dedr_forward.1} parent=1 // pred_check
      _
    $region15: #{dedr_forward.1} parent=1 // pred_check_branch
      %24 = sbr.rel (0) target = $region17
    $region16: #{dedr_forward.1} parent=1 // pred_region
      _
    $region17: #{dedr_forward.1} parent=1 // pred_fallthru
      _
    // Predicated region
    $region18: #{dedr_forward.1} parent=1 // pred_check
      _
    $region19: #{dedr_forward.1} parent=1 // pred_check_branch
      %26 = sbr.rel (0) target = $region21
    $region20: #{dedr_forward.1} parent=1 // pred_region
      _
    $region21: #{dedr_forward.1} parent=1 // pred_fallthru
      _
    // Predicated region
    $region22: #{dedr_forward.1} parent=1 // pred_check
      _
    $region23: #{dedr_forward.1} parent=1 // pred_check_branch
      %28 = sbr.rel (0) target = $region25
    $region24: #{dedr_forward.1} parent=1 // pred_region
      _
    $region25: #{dedr_forward.1} parent=1 // pred_fallthru
      _
    // Predicated region
    $region26: #{dedr_forward.1} parent=1 // pred_check
      _
    $region27: #{dedr_forward.1} parent=1 // pred_check_branch
      %30 = sbr.rel (0) target = $region29
    $region28: #{dedr_forward.1} parent=1 // pred_region
      _
    $region29: #{dedr_forward.1} parent=1 // pred_fallthru
      _
    // Predicated region
    $region30: #{dedr_forward.1} parent=1 // pred_check
      _
    $region31: #{dedr_forward.1} parent=1 // pred_check_branch
      %32 = sbr.rel (0) target = $region33
    $region32: #{dedr_forward.1} parent=1 // pred_region
      _
    $region33: #{dedr_forward.1} parent=1 // pred_fallthru
      _
    // Predicated region
    $region34: #{dedr_forward.1} parent=1 // pred_check
      _
    $region35: #{dedr_forward.1} parent=1 // pred_check_branch
      %34 = sbr.rel (0) target = $region37
    $region36: #{dedr_forward.1} parent=1 // pred_region
      _
    $region37: #{dedr_forward.1} parent=1 // pred_fallthru
      _
    // Predicated region
    $region38: #{dedr_forward.1} parent=1 // pred_check
      _
    $region39: #{dedr_forward.1} parent=1 // pred_check_branch
      %36 = sbr.rel (0) target = $region41
    $region40: #{dedr_forward.1} parent=1 // pred_region
      _
    $region41: #{dedr_forward.1} parent=1 // pred_fallthru
      _
    // Predicated region
    $region42: #{dedr_forward.1} parent=1 // pred_check
      _
    $region43: #{dedr_forward.1} parent=1 // pred_check_branch
      %38 = sbr.rel (0) target = $region45
    $region44: #{dedr_forward.1} parent=1 // pred_region
      _
    $region45: #{dedr_forward.1} parent=1 // pred_fallthru
      _
    %v40 = vld [vmem:[%s1] sm:$0x1]
    %v41 = vld [vmem:[%s1 + $0x1] sm:$0x1]
    %v42 = vld [vmem:[%s0] sm:$0xf]
    %v43 = vld [vmem:[%s0 + $0x4] sm:$0xf]
    %vm44 = vcmask 64512
    %v46 = vsel %vm44, %v40, 0
    %vm48 = vcmask 1043456
    %v50 = vsel %vm48, %v42, 0
    %52 = vmatprep.subr.bf16.mxu0 0
    %53 = vmatpush1.bf16.msra.mxu0 0
    %54 = vmatprep.subr.bf16.mxu0 0
    %55 = vmatpush1.bf16.msra.mxu0 0
    %56 = vmatprep.subr.bf16.mxu0 0
    %57 = vmatpush1.bf16.msra.mxu0 0
    %58 = vmatprep.subr.bf16.mxu0 0
    %59 = vmatpush1.bf16.msra.mxu0 0
    %60 = vmatprep.subr.bf16.mxu0 0
    %61 = vmatpush1.bf16.msra.mxu0 0
    %62 = vmatprep.subr.bf16.mxu0 0
    %63 = vmatpush1.bf16.msra.mxu0 0
    %64 = vmatprep.subr.bf16.mxu0 0
    %65 = vmatpush1.bf16.msra.mxu0 0
    %66 = vmatprep.subr.bf16.mxu0 0
    %67 = vmatpush1.bf16.msra.mxu0 %v50
    %68 = vmatprep.subr.bf16.mxu0 0
    %69 = vmatpush2.bf16.msra.mxu0 0
    %70 = vmatprep.subr.bf16.mxu0 0
    %71 = vmatpush2.bf16.msra.mxu0 0
    %72 = vmatprep.subr.bf16.mxu0 0
    %73 = vmatpush2.bf16.msra.mxu0 0
    %74 = vmatprep.subr.bf16.mxu0 0
    %75 = vmatpush2.bf16.msra.mxu0 0
    %76 = vmatprep.subr.bf16.mxu0 0
    %77 = vmatpush2.bf16.msra.mxu0 0
    %78 = vmatprep.subr.bf16.mxu0 0
    %79 = vmatpush2.bf16.msra.mxu0 0
    %80 = vmatprep.subr.bf16.mxu0 0
    %81 = vmatpush2.bf16.msra.mxu0 0
    %82 = vmatprep.subr.bf16.mxu0 0
    %83 = vmatpush2.bf16.msra.mxu0 0
    %84 = vmatprep.mubr.bf16.mxu0 0
    %85 = vmatmul.mubr.bf16.gmra.mxu0 %v46
    %v86 = vpop.f32.mrf.mxu0
    %v87 = vadd.f32 0.0, %v86
    %v88 = vpop.f32.mrf.mxu0
    %v89 = vpop.f32.mrf.mxu0
    %v90 = vpop.f32.mrf.mxu0
    %91 = vdwg.mxu0
    %v93 = vsel %vm44, %v41, 0
    %v96 = vsel %vm48, %v43, 0
    %98 = vmatprep.subr.bf16.mxu0 0
    %99 = vmatpush1.bf16.msra.mxu0 0
    %100 = vmatprep.subr.bf16.mxu0 0
    %101 = vmatpush1.bf16.msra.mxu0 0
    %102 = vmatprep.subr.bf16.mxu0 0
    %103 = vmatpush1.bf16.msra.mxu0 0
    %104 = vmatprep.subr.bf16.mxu0 0
    %105 = vmatpush1.bf16.msra.mxu0 0
    %106 = vmatprep.subr.bf16.mxu0 0
    %107 = vmatpush1.bf16.msra.mxu0 0
    %108 = vmatprep.subr.bf16.mxu0 0
    %109 = vmatpush1.bf16.msra.mxu0 0
    %110 = vmatprep.subr.bf16.mxu0 0
    %111 = vmatpush1.bf16.msra.mxu0 0
    %112 = vmatprep.subr.bf16.mxu0 0
    %113 = vmatpush1.bf16.msra.mxu0 %v96
    %114 = vmatprep.subr.bf16.mxu0 0
    %115 = vmatpush2.bf16.msra.mxu0 0
    %116 = vmatprep.subr.bf16.mxu0 0
    %117 = vmatpush2.bf16.msra.mxu0 0
    %118 = vmatprep.subr.bf16.mxu0 0
    %119 = vmatpush2.bf16.msra.mxu0 0
    %120 = vmatprep.subr.bf16.mxu0 0
    %121 = vmatpush2.bf16.msra.mxu0 0
    %122 = vmatprep.subr.bf16.mxu0 0
    %123 = vmatpush2.bf16.msra.mxu0 0
    %124 = vmatprep.subr.bf16.mxu0 0
    %125 = vmatpush2.bf16.msra.mxu0 0
    %126 = vmatprep.subr.bf16.mxu0 0
    %127 = vmatpush2.bf16.msra.mxu0 0
    %128 = vmatprep.subr.bf16.mxu0 0
    %129 = vmatpush2.bf16.msra.mxu0 0
    %130 = vmatprep.mubr.bf16.mxu0 0
    %131 = vmatmul.mubr.bf16.gmra.mxu0 %v93
    %v132 = vpop.f32.mrf.mxu0
    %v133 = vadd.f32 0.0, %v132
    %v134 = vpop.f32.mrf.mxu0
    %v135 = vpop.f32.mrf.mxu0
    %v136 = vpop.f32.mrf.mxu0
    %137 = vdwg.mxu0
    %v138 = vadd.f32 %v87, 0.0
    %v139 = vadd.f32 %v133, 0.0
    %v140 = vld [vmem:[%s2] sm:$0x3]
    %142 = vset.pattern.permute.xlu0 0
    %143 = vperm.xlu0 %142, %v140
    %v144 = vpop.permute.xlu0 %143
    %v145 = vrot.slane %v144, 1
    %v148 = vmul.f32 %v138, %v144
    %v149 = vmul.f32 %v139, %v145
    %v150 = vld [vmem:[%s4] sm:$0x1]
    %v151 = vld [vmem:[%s4 + $0x1] sm:$0x1]
    %v152 = vld [vmem:[%s3] sm:$0xf]
    %v153 = vld [vmem:[%s3 + $0x4] sm:$0xf]
    %v155 = vsel %vm44, %v150, 0
    %v158 = vsel %vm48, %v152, 0
    %160 = vmatprep.subr.bf16.mxu0 0
    %161 = vmatpush1.bf16.msra.mxu0 0
    %162 = vmatprep.subr.bf16.mxu0 0
    %163 = vmatpush1.bf16.msra.mxu0 0
    %164 = vmatprep.subr.bf16.mxu0 0
    %165 = vmatpush1.bf16.msra.mxu0 0
    %166 = vmatprep.subr.bf16.mxu0 0
    %167 = vmatpush1.bf16.msra.mxu0 0
    %168 = vmatprep.subr.bf16.mxu0 0
    %169 = vmatpush1.bf16.msra.mxu0 0
    %170 = vmatprep.subr.bf16.mxu0 0
    %171 = vmatpush1.bf16.msra.mxu0 0
    %172 = vmatprep.subr.bf16.mxu0 0
    %173 = vmatpush1.bf16.msra.mxu0 0
    %174 = vmatprep.subr.bf16.mxu0 0
    %175 = vmatpush1.bf16.msra.mxu0 %v158
    %176 = vmatprep.subr.bf16.mxu0 0
    %177 = vmatpush2.bf16.msra.mxu0 0
    %178 = vmatprep.subr.bf16.mxu0 0
    %179 = vmatpush2.bf16.msra.mxu0 0
    %180 = vmatprep.subr.bf16.mxu0 0
    %181 = vmatpush2.bf16.msra.mxu0 0
    %182 = vmatprep.subr.bf16.mxu0 0
    %183 = vmatpush2.bf16.msra.mxu0 0
    %184 = vmatprep.subr.bf16.mxu0 0
    %185 = vmatpush2.bf16.msra.mxu0 0
    %186 = vmatprep.subr.bf16.mxu0 0
    %187 = vmatpush2.bf16.msra.mxu0 0
    %188 = vmatprep.subr.bf16.mxu0 0
    %189 = vmatpush2.bf16.msra.mxu0 0
    %190 = vmatprep.subr.bf16.mxu0 0
    %191 = vmatpush2.bf16.msra.mxu0 0
    %192 = vmatprep.mubr.bf16.mxu0 0
    %193 = vmatmul.mubr.bf16.gmra.mxu0 %v155
    %v194 = vpop.f32.mrf.mxu0
    %v195 = vadd.f32 0.0, %v194
    %v196 = vpop.f32.mrf.mxu0
    %v197 = vpop.f32.mrf.mxu0
    %v198 = vpop.f32.mrf.mxu0
    %199 = vdwg.mxu0
    %v201 = vsel %vm44, %v151, 0
    %v204 = vsel %vm48, %v153, 0
    %206 = vmatprep.subr.bf16.mxu0 0
    %207 = vmatpush1.bf16.msra.mxu0 0
    %208 = vmatprep.subr.bf16.mxu0 0
    %209 = vmatpush1.bf16.msra.mxu0 0
    %210 = vmatprep.subr.bf16.mxu0 0
    %211 = vmatpush1.bf16.msra.mxu0 0
    %212 = vmatprep.subr.bf16.mxu0 0
    %213 = vmatpush1.bf16.msra.mxu0 0
    %214 = vmatprep.subr.bf16.mxu0 0
    %215 = vmatpush1.bf16.msra.mxu0 0
    %216 = vmatprep.subr.bf16.mxu0 0
    %217 = vmatpush1.bf16.msra.mxu0 0
    %218 = vmatprep.subr.bf16.mxu0 0
    %219 = vmatpush1.bf16.msra.mxu0 0
    %220 = vmatprep.subr.bf16.mxu0 0
    %221 = vmatpush1.bf16.msra.mxu0 %v204
    %222 = vmatprep.subr.bf16.mxu0 0
    %223 = vmatpush2.bf16.msra.mxu0 0
    %224 = vmatprep.subr.bf16.mxu0 0
    %225 = vmatpush2.bf16.msra.mxu0 0
    %226 = vmatprep.subr.bf16.mxu0 0
    %227 = vmatpush2.bf16.msra.mxu0 0
    %228 = vmatprep.subr.bf16.mxu0 0
    %229 = vmatpush2.bf16.msra.mxu0 0
    %230 = vmatprep.subr.bf16.mxu0 0
    %231 = vmatpush2.bf16.msra.mxu0 0
    %232 = vmatprep.subr.bf16.mxu0 0
    %233 = vmatpush2.bf16.msra.mxu0 0
    %234 = vmatprep.subr.bf16.mxu0 0
    %235 = vmatpush2.bf16.msra.mxu0 0
    %236 = vmatprep.subr.bf16.mxu0 0
    %237 = vmatpush2.bf16.msra.mxu0 0
    %238 = vmatprep.mubr.bf16.mxu0 0
    %239 = vmatmul.mubr.bf16.gmra.mxu0 %v201
    %v240 = vpop.f32.mrf.mxu0
    %v241 = vadd.f32 0.0, %v240
    %v242 = vpop.f32.mrf.mxu0
    %v243 = vpop.f32.mrf.mxu0
    %v244 = vpop.f32.mrf.mxu0
    %245 = vdwg.mxu0
    %v246 = vadd.f32 %v195, 0.0
    %v247 = vadd.f32 %v241, 0.0
    %v248 = vld [vmem:[%s5] sm:$0x3]
    %250 = vset.pattern.permute.xlu0 0
    %251 = vperm.xlu0 %250, %v248
    %v252 = vpop.permute.xlu0 %251
    %v253 = vrot.slane %v252, 1
    %v256 = vmul.f32 %v246, %v252
    %v257 = vmul.f32 %v247, %v253
    %v258 = vld [vmem:[%s6] sm:$0x3]
    %v259 = vld [vmem:[%s6 + $0x2] sm:$0x3]
    %v260 = vunpack.c.l.bf16 %v258
    %v261 = vunpack.c.l.bf16 %v259
    %vm262 = vcmask 158720
    %v263 = vsel %vm262, %v260, 0.0
    %v264 = vrot.slane %v263, 4
    %v265 = vadd.f32 %v263, %v264
    %v266 = vrot.slane %v265, 2
    %v267 = vadd.f32 %v265, %v266
    %v268 = vrot.slane %v267, 1
    %v269 = vadd.f32 %v267, %v268
    %v270 = vsel %vm262, %v261, 0.0
    %v271 = vrot.slane %v270, 4
    %v272 = vadd.f32 %v270, %v271
    %v273 = vrot.slane %v272, 2
    %v274 = vadd.f32 %v272, %v273
    %v275 = vrot.slane %v274, 1
    %v276 = vadd.f32 %v274, %v275
    %v277 = vmul.f32 %v269, 0.25
    %v278 = vmul.f32 %v276, 0.25
    %v279 = vpack.c.bf16 %v277, %v277
    %v280 = vpack.c.bf16 %v278, %v278
    %v281 = vld [vmem:[%s7] sm:$0xf]
    %v282 = vld [vmem:[%s7 + $0x4] sm:$0xf]
    %v283 = vld [vmem:[%s7 + $0x8] sm:$0x3]
    %v284 = vld [vmem:[%s8] sm:$0x1]
    %v286 = vlaneseq
    %v287 = vshrl.u32 %v286, 7
    %v288 = vsub.s32 0, %v287
    %v289 = vrot.slane %v284, %v288
    %v293 = vunpack.c.l.b16 %v279
    %v294 = vunpack.c.l.b16 %v280
    %vm295 = vcmask 1041409
    %v296 = vsel %vm295, %v294, %v293
    %v297 = vpack.c.b16 %v296, %v296
    %v301 = vunpack.c.l.b16 %v281
    %v302 = vunpack.c.l.b16 %v282
    %v303 = vunpack.c.l.b16 %v283
    %v304 = vpack.c.b16 %v302, %v301
    %v305 = vpack.c.b16 %v303, %v303
    %vm307 = vcmask 162816
    %v309 = vsel %vm307, %v297, 0
    %vm311 = vcmask 1041408
    %v313 = vsel %vm311, %v305, 0
    %315 = vmatprep.subr.bf16.mxu0 0
    %316 = vmatpush1.bf16.msra.mxu0 0
    %317 = vmatprep.subr.bf16.mxu0 0
    %318 = vmatpush1.bf16.msra.mxu0 0
    %319 = vmatprep.subr.bf16.mxu0 0
    %320 = vmatpush1.bf16.msra.mxu0 0
    %321 = vmatprep.subr.bf16.mxu0 0
    %322 = vmatpush1.bf16.msra.mxu0 0
    %323 = vmatprep.subr.bf16.mxu0 0
    %324 = vmatpush1.bf16.msra.mxu0 0
    %325 = vmatprep.subr.bf16.mxu0 0
    %326 = vmatpush1.bf16.msra.mxu0 0
    %327 = vmatprep.subr.bf16.mxu0 0
    %328 = vmatpush1.bf16.msra.mxu0 %v313
    %329 = vmatprep.subr.bf16.mxu0 0
    %330 = vmatpush1.bf16.msra.mxu0 %v304
    %331 = vmatprep.subr.bf16.mxu0 0
    %332 = vmatpush2.bf16.msra.mxu0 0
    %333 = vmatprep.subr.bf16.mxu0 0
    %334 = vmatpush2.bf16.msra.mxu0 0
    %335 = vmatprep.subr.bf16.mxu0 0
    %336 = vmatpush2.bf16.msra.mxu0 0
    %337 = vmatprep.subr.bf16.mxu0 0
    %338 = vmatpush2.bf16.msra.mxu0 0
    %339 = vmatprep.subr.bf16.mxu0 0
    %340 = vmatpush2.bf16.msra.mxu0 0
    %341 = vmatprep.subr.bf16.mxu0 0
    %342 = vmatpush2.bf16.msra.mxu0 0
    %343 = vmatprep.subr.bf16.mxu0 0
    %344 = vmatpush2.bf16.msra.mxu0 0
    %345 = vmatprep.subr.bf16.mxu0 0
    %346 = vmatpush2.bf16.msra.mxu0 0
    %347 = vmatprep.mubr.bf16.mxu0 0
    %348 = vmatmul.mubr.bf16.gmra.mxu0 %v309
    %v349 = vpop.f32.mrf.mxu0
    %v350 = vadd.f32 %v289, %v349
    %v351 = vpop.f32.mrf.mxu0
    %v352 = vpop.f32.mrf.mxu0
    %v353 = vpop.f32.mrf.mxu0
    %354 = vdwg.mxu0
    %v356 = vrot.slane %v350, 1
    %v359 = vadd.f32 %v256, %v350
    %v360 = vadd.f32 %v257, %v356
    %v363 = vrot.slane %v149, 7
    %v364 = vsel %vm295, %v363, %v148
    %v368 = vrot.slane %v360, 7
    %v369 = vsel %vm295, %v368, %v359
    %370 = vrot.lane.b32.xlu0 %v369, 32
    %v371 = vpop.permute.xlu0 %370
    %vm373 = vcmask 261120
    %v374 = vsel %vm373, %v364, %v371
    %v375 = vpack.c.bf16 %v374, %v374
    %v376 = vld [vmem:[%s9] sm:$0xf]
    %v377 = vld [vmem:[%s9 + $0x4] sm:$0xf]
    %v378 = vld [vmem:[%s9 + $0x8] sm:$0xf]
    %v379 = vld [vmem:[%s9 + $0xc] sm:$0xf]
    %v380 = vld [vmem:[%s9 + $0x10] sm:$0xf]
    %v381 = vld [vmem:[%s9 + $0x14] sm:$0xf]
    %v382 = vld [vmem:[%s9 + $0x18] sm:$0xf]
    %v383 = vld [vmem:[%s9 + $0x1c] sm:$0xf]
    %v384 = vld [vmem:[%s10] sm:$0x1]
    %v386 = vlaneseq
    %v387 = vshrl.u32 %v386, 7
    %v388 = vsub.s32 0, %v387
    %v389 = vrot.slane %v384, %v388
    %v399 = vunpack.c.l.b16 %v376
    %v400 = vunpack.c.l.b16 %v377
    %v401 = vunpack.c.l.b16 %v378
    %v402 = vunpack.c.l.b16 %v379
    %v403 = vunpack.c.l.b16 %v380
    %v404 = vunpack.c.l.b16 %v381
    %v405 = vunpack.c.l.b16 %v382
    %v406 = vunpack.c.l.b16 %v383
    %v407 = vpack.c.b16 %v400, %v399
    %v408 = vpack.c.b16 %v402, %v401
    %v409 = vpack.c.b16 %v404, %v403
    %v410 = vpack.c.b16 %v406, %v405
    %vm415 = vcmask 523264
    %v417 = vsel %vm415, %v375, 0
    %419 = vmatprep.subr.bf16.mxu0 0
    %420 = vmatpush1.bf16.msra.mxu0 0
    %421 = vmatprep.subr.bf16.mxu0 0
    %422 = vmatpush1.bf16.msra.mxu0 0
    %423 = vmatprep.subr.bf16.mxu0 0
    %424 = vmatpush1.bf16.msra.mxu0 0
    %425 = vmatprep.subr.bf16.mxu0 0
    %426 = vmatpush1.bf16.msra.mxu0 0
    %427 = vmatprep.subr.bf16.mxu0 0
    %428 = vmatpush1.bf16.msra.mxu0 %v410
    %429 = vmatprep.subr.bf16.mxu0 0
    %430 = vmatpush1.bf16.msra.mxu0 %v409
    %431 = vmatprep.subr.bf16.mxu0 0
    %432 = vmatpush1.bf16.msra.mxu0 %v408
    %433 = vmatprep.subr.bf16.mxu0 0
    %434 = vmatpush1.bf16.msra.mxu0 %v407
    %435 = vmatprep.subr.bf16.mxu0 0
    %436 = vmatpush2.bf16.msra.mxu0 0
    %437 = vmatprep.subr.bf16.mxu0 0
    %438 = vmatpush2.bf16.msra.mxu0 0
    %439 = vmatprep.subr.bf16.mxu0 0
    %440 = vmatpush2.bf16.msra.mxu0 0
    %441 = vmatprep.subr.bf16.mxu0 0
    %442 = vmatpush2.bf16.msra.mxu0 0
    %443 = vmatprep.subr.bf16.mxu0 0
    %444 = vmatpush2.bf16.msra.mxu0 0
    %445 = vmatprep.subr.bf16.mxu0 0
    %446 = vmatpush2.bf16.msra.mxu0 0
    %447 = vmatprep.subr.bf16.mxu0 0
    %448 = vmatpush2.bf16.msra.mxu0 0
    %449 = vmatprep.subr.bf16.mxu0 0
    %450 = vmatpush2.bf16.msra.mxu0 0
    %451 = vmatprep.mubr.bf16.mxu0 0
    %452 = vmatmul.mubr.bf16.gmra.mxu0 %v417
    %v453 = vpop.f32.mrf.mxu0
    %v454 = vadd.f32 %v389, %v453
    %v455 = vpop.f32.mrf.mxu0
    %v456 = vpop.f32.mrf.mxu0
    %v457 = vpop.f32.mrf.mxu0
    %458 = vdwg.mxu0
    %v459 = vtanh.pop %v454
    %460 = vst [vmem:[#allocation2] sm:$0x3] %v459
    // Predicated region
    $region46: #{dedr_forward.1} parent=1 // pred_check
      _
    $region47: #{dedr_forward.1} parent=1 // pred_check_branch
      %462 = sbr.rel (0) target = $region49
    $region48: #{dedr_forward.1} parent=1 // pred_region
      %s464 = ssub.s32 32, 32
      %465 = vsyncadd [#allocation3], %s464
      %s467 = sshll.u32 [#allocation2], 4
      %s468 = int_to_ptr.vmem [resolvable:$true] %s467
      %470 = dma.vmem_to_hbm [thread:$0]  %s468, 32, %s11, [#allocation3]
    $region49: #{dedr_forward.1} parent=1 // pred_fallthru
      _
    // Predicated region
    $region50: #{dedr_forward.1} parent=1 // pred_check
      _
    $region51: #{dedr_forward.1} parent=1 // pred_check_branch
      %472 = sbr.rel (0) target = $region53
    $region52: #{dedr_forward.1} parent=1 // pred_region
      %473 = dma.done [#allocation3], 32
    $region53: #{dedr_forward.1} parent=1 // pred_fallthru
      _
    %474 = vsyncpa [#allocation3], 1

</llo_original>
